<compile_context>
chip_gen: v7x
topology: tpu7x:2x2x1
jax: 0.10.0
libtpu: 0.0.40
codegen_flags: <defaults>
</compile_context>

<pallas_src>
import jax
import jax.numpy as jnp
from jax.experimental import pallas as pl
from jax.experimental.pallas import tpu as pltpu

_LANE = 128


def _round_up(x, m):
    return ((x + m - 1) // m) * m


def _prelu_kernel(w_ref, x_ref, o_ref):
    # w_ref: SMEM (1,) scalar parameter; x_ref/o_ref: lane-dense VMEM tiles.
    x = x_ref[...]
    w = w_ref[0]
    o_ref[...] = jnp.where(x > 0, x, w * x)


def prelu_pallas(x, weight, *, target_block_bytes=4 * 1024 * 1024):
    """PReLU forward for an arbitrary-shaped float array with a scalar weight."""
    orig_shape = x.shape
    orig_dtype = x.dtype
    total = x.size
    itemsize = jnp.dtype(orig_dtype).itemsize
    # Sublane packing: 8 rows for 32-bit dtypes, 16 for bf16, 32 for int8/fp8.
    sublane_pack = max(8, 32 // itemsize)

    # Flatten to a lane-dense (rows, 128) slab.  Only pad (and later slice)
    # when the element count is not a multiple of 128 -- jnp.pad / the slice
    # are full extra HBM passes in XLA, so skip them whenever possible.
    flat = x.reshape(-1)
    lane_pad = (-total) % _LANE
    if lane_pad:
        flat = jnp.pad(flat, (0, lane_pad))
    rows = flat.size // _LANE
    x2d = flat.reshape(rows, _LANE)

    # Dtype-aware tile: ~target_block_bytes per block regardless of itemsize.
    max_block_rows = max(
        sublane_pack,
        _round_up(target_block_bytes // (_LANE * itemsize), sublane_pack),
    )
    # Below ~1 MiB of data a single block is cheapest (one DMA in, one out).
    single_block_rows = max_block_rows // 4

    if rows <= single_block_rows:
        block_rows = rows  # full-array block (any row count is legal here)
        grid = (1,)
    else:
        # At least 2 blocks so both v7x TensorCores get work; otherwise cap at
        # the ~4 MiB tile.  Ragged last block is handled by the cdiv grid.
        half_rows = _round_up(pl.cdiv(rows, 2), sublane_pack)
        block_rows = min(max_block_rows, half_rows)
        grid = (pl.cdiv(rows, block_rows),)

    out2d = pl.pallas_call(
        _prelu_kernel,
        out_shape=jax.ShapeDtypeStruct((rows, _LANE), orig_dtype),
        grid=grid,
        in_specs=[
            pl.BlockSpec(memory_space=pltpu.MemorySpace.SMEM),    # scalar weight
            pl.BlockSpec((block_rows, _LANE), lambda i: (i, 0)),  # x tile
        ],
        out_specs=pl.BlockSpec((block_rows, _LANE), lambda i: (i, 0)),
        compiler_params=pltpu.CompilerParams(
            dimension_semantics=("parallel",),
            vmem_limit_bytes=48 * 1024 * 1024,
        ),
        cost_estimate=pl.CostEstimate(
            flops=total,
            transcendentals=0,
            bytes_accessed=2 * total * itemsize,
        ),
    )(weight.astype(orig_dtype), x2d)

    if lane_pad:
        return out2d.reshape(-1)[:total].reshape(orig_shape)
    return out2d.reshape(orig_shape)


if __name__ == "__main__":
    # Deterministic parameter init, matching nn.PReLU(num_parameters=1, init=0.25).
    num_parameters = 1
    init = 0.25
    weight = jnp.full((num_parameters,), init, dtype=jnp.float32)

    key = jax.random.PRNGKey(0)
    x = jax.random.normal(key, (2, 4, 16, 16), dtype=jnp.float32)  # NCHW

    y = prelu_pallas(x, weight)
    y = jax.block_until_ready(y)

    # Reference (pure JAX) check of torch.where(x > 0, x, weight * x) semantics.
    y_ref = jnp.where(x > 0, x, weight * x)
    assert y.shape == x.shape and y.dtype == x.dtype
    assert jnp.allclose(y, y_ref, atol=1e-6, rtol=1e-6)

    print("KERNEL_OK")
</pallas_src>

<mosaic_0001>
module attributes {stable_mosaic.version = 11 : i64} {
  func.func @_prelu_kernel(%arg0: i32, %arg1: memref<1xf32, #tpu.memory_space<smem>>, %arg2: memref<16x128xf32, #tpu.memory_space<vmem>>, %arg3: memref<16x128xf32, #tpu.memory_space<vmem>>) attributes {dimension_semantics = [#tpu.dimension_semantics<parallel>], iteration_bounds = array<i64: 1>, scalar_prefetch = 0 : i64, scratch_operands = 0 : i64, tpu.core_type = #tpu.core_type<tc>, window_params = [{transform_indices = @transform_0, window_bounds = array<i64: 1>}, {transform_indices = @transform_1, window_bounds = array<i64: 16, 128>}, {transform_indices = @transform_2, window_bounds = array<i64: 16, 128>}]} {
    %c0 = arith.constant 0 : index
    %c0_0 = arith.constant 0 : index
    %0 = vector.load %arg2[%c0, %c0_0] : memref<16x128xf32, #tpu.memory_space<vmem>>, vector<16x128xf32>
    %c0_1 = arith.constant 0 : index
    %1 = memref.load %arg1[%c0_1] : memref<1xf32, #tpu.memory_space<smem>>
    %cst = arith.constant 0.000000e+00 : f32
    %2 = vector.broadcast %cst : f32 to vector<16x128xf32>
    %3 = arith.cmpf ogt, %0, %2 : vector<16x128xf32>
    %4 = vector.broadcast %1 : f32 to vector<16x128xf32>
    %5 = arith.mulf %4, %0 : vector<16x128xf32>
    %6 = arith.select %3, %0, %5 : vector<16x128xi1>, vector<16x128xf32>
    %c0_2 = arith.constant 0 : index
    %c0_3 = arith.constant 0 : index
    %7 = vector.load %arg3[%c0_2, %c0_3] : memref<16x128xf32, #tpu.memory_space<vmem>>, vector<16x128xf32>
    tpu.vector_store %arg3[%c0_2, %c0_3], %6 {strides = array<i32>} : memref<16x128xf32, #tpu.memory_space<vmem>>, vector<16x128xf32>,
    return
  }
  func.func @transform_0(%arg0: i32) -> i32 {
    %c0_i32 = arith.constant 0 : i32
    %c0_i32_0 = arith.constant 0 : i32
    return %c0_i32 : i32
  }
  func.func @transform_1(%arg0: i32) -> (i32, i32) {
    %c0_i32 = arith.constant 0 : i32
    %c0_i32_0 = arith.constant 0 : i32
    return %arg0, %c0_i32 : i32, i32
  }
  func.func @transform_2(%arg0: i32) -> (i32, i32) {
    %c0_i32 = arith.constant 0 : i32
    %c0_i32_0 = arith.constant 0 : i32
    return %arg0, %c0_i32 : i32, i32
  }
}

</mosaic_0001>

<llo_original>
// kernel: tpu_custom_call.1
$region0: #{tpu_custom_call.1}
  #allocation0 [shape = 'u32[]', space=smem, size = 0x4, offset = 0x4, fixed_abs, tag = 'smem constant byte address 0x4 - core index']
  #allocation1 [shape = 'u32[144,128]{1,0:T(1,128)}', space=vmem, size = 0x12000, scoped, tag = 'internal scratch']
  #allocation2 [shape = 'f32[1]{0:T(128)S(6)}', space=smem, size = 0x200, scoped, tag = 'scoped memory for tpu_custom_call.1']
  %s0 = inlined_call_operand.<no memory space> [shape: f32[1], index: 0, kind: input, shape index: {}]
  %s1 = inlined_call_operand.hbm [shape: f32[16,128], index: 1, kind: input, shape index: {}]
  %s2 = inlined_call_operand.hbm [shape: f32[16,128], index: 2, kind: output, shape index: {}]
  %s3 = sld [smem:[#allocation0]]
  $region22: #{tpu_custom_call.1} parent=0
    _
  %s5 = ssub.s32 1, %s3
  %s6 = scalar_select 0, %s5, %s3
  %7 = sst [smem:[#allocation2]] %s0
  $region1: #{tpu_custom_call.1} parent=0
    #allocation3 [shape = 'u8[8192]{0}', space=vmem, size = 0x2000, scoped, tag = 'input window, operand 1, single buffered']
    #allocation4 [shape = 's32[1]{0}', space=sflag, size = 0x4, scoped, tag = 'scoped memory for tpu_custom_call.1']
    #allocation5 [shape = 's32[1]{0}', space=sflag, size = 0x4, scoped, tag = 'scoped memory for tpu_custom_call.1']
    #allocation6 [shape = 'u8[8192]{0}', space=vmem, size = 0x2000, scoped, tag = 'output window, operand 0, single buffered']
    %8 = vsyncpa [#allocation4], 0
    %9 = vsyncpa [#allocation5], 0
    // Predicated region
    $region2: #{tpu_custom_call.1} parent=1 // pred_check
      _
    $region3: #{tpu_custom_call.1} parent=1 // pred_check_branch
      %11 = sbr.rel (0) target = $region5
    $region4: #{tpu_custom_call.1} parent=1 // pred_region
      _
    $region5: #{tpu_custom_call.1} parent=1 // pred_fallthru
      _
    // Predicated region
    $region6: #{tpu_custom_call.1} parent=1 // pred_check
      _
    $region7: #{tpu_custom_call.1} parent=1 // pred_check_branch
      %13 = sbr.rel (0) target = $region9
    $region8: #{tpu_custom_call.1} parent=1 // pred_region
      %s15 = ssub.s32 256, 256
      %16 = vsyncadd [#allocation4], %s15
      %s17 = sshll.u32 [#allocation3], 4
      %s18 = int_to_ptr.vmem [resolvable:$true] %s17
      %23 = dma.hbm_to_vmem [thread:$0]  %s1, 256, %s18, [#allocation4], 128, 128, 8
    $region9: #{tpu_custom_call.1} parent=1 // pred_fallthru
      _
    // Predicated region
    $region10: #{tpu_custom_call.1} parent=1 // pred_check
      _
    $region11: #{tpu_custom_call.1} parent=1 // pred_check_branch
      %25 = sbr.rel (0) target = $region13
    $region12: #{tpu_custom_call.1} parent=1 // pred_region
      %26 = dma.done [#allocation4], 256
    $region13: #{tpu_custom_call.1} parent=1 // pred_fallthru
      _
    %v27 = vld [vmem:[#allocation3] sm:$0xff]
    %v28 = vld [vmem:[#allocation3 + $0x8] sm:$0xff]
    %s29 = sld [smem:[#allocation2]]
    %vm30 = vcmp.gt.f32.partialorder %v27, 0.0
    %vm31 = vcmp.gt.f32.partialorder %v28, 0.0
    %v32 = vstv %s29
    %v33 = vmul.f32 %v32, %v27
    %v34 = vmul.f32 %v32, %v28
    %v35 = vsel %vm30, %v27, %v33
    %v36 = vsel %vm31, %v28, %v34
    %37 = vst [vmem:[#allocation6] sm:$0xff] %v35
    %38 = vst [vmem:[#allocation6 + $0x8] sm:$0xff] %v36
    // Predicated region
    $region14: #{tpu_custom_call.1} parent=1 // pred_check
      _
    $region15: #{tpu_custom_call.1} parent=1 // pred_check_branch
      %40 = sbr.rel (0) target = $region17
    $region16: #{tpu_custom_call.1} parent=1 // pred_region
      %s42 = ssub.s32 256, 256
      %43 = vsyncadd [#allocation5], %s42
      %s44 = sshll.u32 [#allocation6], 4
      %s45 = int_to_ptr.vmem [resolvable:$true] %s44
      %50 = dma.vmem_to_hbm [thread:$0]  %s45, 256, %s2, [#allocation5], 128, 128, 8
    $region17: #{tpu_custom_call.1} parent=1 // pred_fallthru
      _
    // Predicated region
    $region18: #{tpu_custom_call.1} parent=1 // pred_check
      _
    $region19: #{tpu_custom_call.1} parent=1 // pred_check_branch
      %52 = sbr.rel (0) target = $region21
    $region20: #{tpu_custom_call.1} parent=1 // pred_region
      %53 = dma.done [#allocation5], 256
    $region21: #{tpu_custom_call.1} parent=1 // pred_fallthru
      _
    %54 = vsyncpa [#allocation4], 1
    %55 = vsyncpa [#allocation5], 1

</llo_original>
